<compile_context>
chip_gen: v6e
topology: v6e:2x2x1
jax: 0.10.0
libtpu: 0.0.40
codegen_flags: <defaults>
</compile_context>

<pallas_src>
import functools
import math

import jax
import jax.numpy as jnp
from jax import lax
from jax.experimental import pallas as pl
from jax.experimental.pallas import tpu as pltpu


def _embed_onehot_kernel(ids_ref, table_ref, out_ref, *, vocab_size, scale):
    """One grid step: a (ts, D) tile of scaled embeddings via an MXU one-hot matmul.

    ids_ref   : VMEM (1, ts, 1) int32   token ids for this tile (along sublanes)
    table_ref : VMEM (V, D)             whole embedding table, grid-invariant
    out_ref   : VMEM (ts, D)            output tile (full-tile, lane-dense store)
    """
    # Clip inside the kernel: VPU work is free filler under the MXU/DMA slack and
    # removes the wrapper-side extra HBM pass over the ids.
    ids_col = jnp.clip(ids_ref[0], 0, vocab_size - 1)                  # (ts, 1) int32
    ts = ids_col.shape[0]
    vocab_iota = lax.broadcasted_iota(jnp.int32, (ts, vocab_size), 1)  # (ts, V)
    one_hot = (ids_col == vocab_iota).astype(table_ref.dtype)          # (ts, V)
    # Gather all ts rows at once on the MXU; accumulate + scale in f32, cast on store.
    acc = jnp.dot(one_hot, table_ref[...], preferred_element_type=jnp.float32)
    out_ref[...] = (acc * scale).astype(out_ref.dtype)


def _tpu_chip_hints():
    """Best-effort (scoped_vmem_default, vmem_capacity, onehot_vocab_limit).

    Falls back to the most conservative values (v5e scoped default, v7x VMEM capacity,
    v5e one-hot crossover) if hardware info is unavailable.
    """
    scoped_default = 16 << 20       # v5e scoped-VMEM default
    vmem_capacity = 64 << 20        # v7x per-TC VMEM (smallest of the three gens)
    onehot_vocab_limit = 256        # v5e MXU/HBM crossover for the one-hot path
    try:
        info = pltpu.get_tpu_info()
        vmem_capacity = int(getattr(info, "vmem_capacity_bytes", vmem_capacity))
        ver = str(getattr(info, "chip_version", "")).lower()
        if "v5" in ver:
            scoped_default, onehot_vocab_limit = 16 << 20, 256
        elif ver:
            scoped_default, onehot_vocab_limit = 32 << 20, 1024
    except Exception:
        pass
    return scoped_default, vmem_capacity, onehot_vocab_limit


def input_embedding_forward(input_ids, attention_mask, emb_table, d_model,
                            *, seq_tile=512, out_dtype=None):
    """Pallas implementation of InputEmbedding.forward (post-tokenization part).

    Returns (embeddings (B, S, D), padding_mask (B, 1, 1, S) bool).
    """
    B, S = input_ids.shape
    V, D = emb_table.shape
    assert D == d_model
    assert seq_tile % 8 == 0, "seq_tile must be a multiple of 8 (sublane alignment)"
    if out_dtype is None:
        out_dtype = emb_table.dtype

    scale = math.sqrt(d_model)
    # Padding mask: trivial elementwise comparison + reshape -> plain JAX glue.
    padding_mask = (attention_mask == 0)[:, None, None, :]

    scoped_default, vmem_capacity, onehot_vocab_limit = _tpu_chip_hints()

    # Flatten token dim; shrink the tile for tiny batches so a single full tile covers
    # everything (no pad pass, no output slice copy, one grid step).
    n = B * S
    seq_tile_eff = min(seq_tile, max(8, pl.cdiv(n, 8) * 8))
    num_tiles = pl.cdiv(n, seq_tile_eff)
    n_pad = num_tiles * seq_tile_eff

    # VMEM budget: resident table + double-buffered ids/output tiles + in-kernel
    # one-hot + f32 accumulator + internal-scratch headroom.
    itemsize_tab = jnp.dtype(emb_table.dtype).itemsize
    itemsize_out = jnp.dtype(out_dtype).itemsize
    needed = (V * D * itemsize_tab                       # resident table (single-buffered)
              + 2 * seq_tile_eff * D * itemsize_out      # double-buffered output tiles
              + 2 * seq_tile_eff * 4                     # double-buffered id tiles
              + seq_tile_eff * V * itemsize_tab          # (ts, V) one-hot intermediate
              + seq_tile_eff * D * 4                     # (ts, D) f32 accumulator
              + (4 << 20))                               # compiler/internal scratch headroom

    table_fits = needed <= int(0.75 * vmem_capacity)     # leave headroom (v7x: 64 MiB/TC)
    if (not table_fits) or V > onehot_vocab_limit:
        # TODO(synk): HBM-resident table (memory_space=pl.ANY) + manual make_async_copy
        # row-gather with several outstanding DMAs per tile for large vocabularies
        # (table >> VMEM on v7x, or V above the v5e one-hot MXU/HBM crossover);
        # plain XLA gather fallback here keeps semantics correct in the meantime.
        ids = jnp.clip(input_ids.astype(jnp.int32), 0, V - 1)
        emb = (jnp.take(emb_table, ids, axis=0).astype(jnp.float32) * scale).astype(out_dtype)
        return emb, padding_mask

    flat_ids = input_ids.astype(jnp.int32).reshape(n)
    if n_pad != n:
        flat_ids = jnp.pad(flat_ids, (0, n_pad - n))     # pad ids only (4 B/token, cheap)
    # ids along sublanes so the (ts, 1) == (ts, V) one-hot compare needs no transpose.
    ids_tiles = flat_ids.reshape(num_tiles, seq_tile_eff, 1)

    # Only raise the scoped-VMEM limit when needed, and never set it below the
    # v6e/v7x 32 MiB default (setting a lower limit would shrink the compiler budget).
    vmem_limit = None if needed <= scoped_default else max(needed, 32 << 20)

    kernel = functools.partial(_embed_onehot_kernel, vocab_size=V, scale=scale)

    out_flat = pl.pallas_call(
        kernel,
        grid=(num_tiles,),
        in_specs=[
            # token ids: one (1, ts, 1) block per grid step
            pl.BlockSpec((1, seq_tile_eff, 1), lambda i: (i, 0, 0)),
            # embedding table: whole array resident in VMEM, grid-invariant (no per-step DMA)
            pl.BlockSpec(memory_space=pltpu.MemorySpace.VMEM),
        ],
        # Full-D output block (never tile D below 128): unmasked lane-dense stores.
        out_specs=pl.BlockSpec((seq_tile_eff, D), lambda i: (i, 0)),
        out_shape=jax.ShapeDtypeStruct((n, D), out_dtype),
        compiler_params=pltpu.CompilerParams(
            dimension_semantics=("parallel",),
            vmem_limit_bytes=vmem_limit,
        ),
    )(ids_tiles, emb_table)

    embeddings = out_flat.reshape(B, S, D)               # contiguous reshape, no copy
    return embeddings, padding_mask


def make_embedding_table(key, vocab_size, d_model, padding_token_id, dtype=jnp.bfloat16):
    """nn.Embedding-style init (N(0,1)) with the padding row zeroed; bf16 halves traffic."""
    table = jax.random.normal(key, (vocab_size, d_model), dtype=jnp.float32)
    table = table.at[padding_token_id].set(0.0)
    return table.astype(dtype)


if __name__ == "__main__":
    # Small synthetic config (stand-in for tokenizer output).
    # TODO(synk): string tokenization (AutoTokenizer) has no Pallas equivalent; ids are synthetic.
    d_model = 128
    vocab_size = 256
    padding_token_id = 0
    B, S = 2, 8

    key = jax.random.PRNGKey(0)
    k_table, k_ids = jax.random.split(key)

    emb_table = make_embedding_table(k_table, vocab_size, d_model, padding_token_id,
                                     dtype=jnp.bfloat16)

    # Synthetic "tokenized" batch: sequence 0 full length, sequence 1 padded after 5 tokens.
    lengths = jnp.array([S, 5], dtype=jnp.int32)
    raw_ids = jax.random.randint(k_ids, (B, S), 1, vocab_size, dtype=jnp.int32)
    positions = jnp.arange(S)[None, :]
    attention_mask = (positions < lengths[:, None]).astype(jnp.int32)   # (B, S)
    input_ids = jnp.where(attention_mask == 1, raw_ids, padding_token_id)

    embeddings, padding_mask = input_embedding_forward(
        input_ids, attention_mask, emb_table, d_model
    )
    embeddings = jax.block_until_ready(embeddings)
    padding_mask = jax.block_until_ready(padding_mask)

    # Reference check (pure JAX): same bf16 table, gather + f32 scale, cast to output dtype.
    ref_emb = (emb_table.astype(jnp.float32)[input_ids] * math.sqrt(d_model)).astype(embeddings.dtype)
    ref_mask = (attention_mask == 0)[:, None, None, :]

    assert embeddings.shape == (B, S, d_model)
    assert padding_mask.shape == (B, 1, 1, S)
    assert jnp.allclose(embeddings.astype(jnp.float32), ref_emb.astype(jnp.float32),
                        atol=1e-2, rtol=1e-2)
    assert bool(jnp.all(padding_mask == ref_mask))

    print("KERNEL_OK")
</pallas_src>

<mosaic_0001>
module attributes {stable_mosaic.version = 11 : i64} {
  func.func @_embed_onehot_kernel(%arg0: i32, %arg1: memref<1x16x1xi32, #tpu.memory_space<vmem>>, %arg2: memref<256x128xbf16, #tpu.memory_space<vmem>>, %arg3: memref<16x128xbf16, #tpu.memory_space<vmem>>) attributes {dimension_semantics = [#tpu.dimension_semantics<parallel>], iteration_bounds = array<i64: 1>, scalar_prefetch = 0 : i64, scratch_operands = 0 : i64, tpu.core_type = #tpu.core_type<tc>, window_params = [{transform_indices = @transform_0, window_bounds = array<i64: 1, 16, 1>}, {pipeline_mode = #tpu.pipeline_mode<synchronous>, transform_indices = @transform_1, window_bounds = array<i64: 256, 128>}, {transform_indices = @transform_2, window_bounds = array<i64: 16, 128>}]} {
    %c0 = arith.constant 0 : index
    %c0_0 = arith.constant 0 : index
    %c0_1 = arith.constant 0 : index
    %0 = vector.load %arg1[%c0, %c0_0, %c0_1] : memref<1x16x1xi32, #tpu.memory_space<vmem>>, vector<1x16x1xi32>
    %1 = vector.shape_cast %0 : vector<1x16x1xi32> to vector<16x1xi32>
    %c0_i32 = arith.constant 0 : i32
    %c255_i32 = arith.constant 255 : i32
    %2 = vector.broadcast %c0_i32 : i32 to vector<16x1xi32>
    %3 = arith.maxsi %2, %1 : vector<16x1xi32>
    %4 = vector.broadcast %c255_i32 : i32 to vector<16x1xi32>
    %5 = arith.minsi %4, %3 : vector<16x1xi32>
    %6 = tpu.iota {dimensions = array<i32: 1>} : vector<16x256xi32>
    %7 = vector.broadcast %5 : vector<16x1xi32> to vector<16x256xi32>
    %8 = arith.cmpi eq, %7, %6 : vector<16x256xi32>
    %9 = arith.extui %8 : vector<16x256xi1> to vector<16x256xi32>
    %10 = arith.sitofp %9 : vector<16x256xi32> to vector<16x256xf32>
    %11 = arith.truncf %10 : vector<16x256xf32> to vector<16x256xbf16>
    %c0_2 = arith.constant 0 : index
    %c0_3 = arith.constant 0 : index
    %12 = vector.load %arg2[%c0_2, %c0_3] : memref<256x128xbf16, #tpu.memory_space<vmem>>, vector<256x128xbf16>
    %cst = arith.constant dense<0.000000e+00> : vector<16x128xf32>
    %13 = tpu.matmul %11, %12, %cst {dimension_numbers = #tpu.dot_dimension_numbers<[1], [0], [0], [1], [0, 0, 1, 1], [], []>} : vector<16x256xbf16>, vector<256x128xbf16>, vector<16x128xf32> -> vector<16x128xf32>
    %cst_4 = arith.constant 11.3137083 : f32
    %14 = vector.broadcast %cst_4 : f32 to vector<16x128xf32>
    %15 = arith.mulf %13, %14 : vector<16x128xf32>
    %16 = arith.truncf %15 : vector<16x128xf32> to vector<16x128xbf16>
    %c0_5 = arith.constant 0 : index
    %c0_6 = arith.constant 0 : index
    %17 = vector.load %arg3[%c0_5, %c0_6] : memref<16x128xbf16, #tpu.memory_space<vmem>>, vector<16x128xbf16>
    tpu.vector_store %arg3[%c0_5, %c0_6], %16 {strides = array<i32>} : memref<16x128xbf16, #tpu.memory_space<vmem>>, vector<16x128xbf16>,
    return
  }
  func.func @transform_0(%arg0: i32) -> (i32, i32, i32) {
    %c0_i32 = arith.constant 0 : i32
    %c0_i32_0 = arith.constant 0 : i32
    %c0_i32_1 = arith.constant 0 : i32
    return %arg0, %c0_i32, %c0_i32_0 : i32, i32, i32
  }
  func.func @transform_1(%arg0: i32) -> (i32, i32) {
    %c0_i32 = arith.constant 0 : i32
    %c0_i32_0 = arith.constant 0 : i32
    %c0_i32_1 = arith.constant 0 : i32
    return %c0_i32, %c0_i32_0 : i32, i32
  }
  func.func @transform_2(%arg0: i32) -> (i32, i32) {
    %c0_i32 = arith.constant 0 : i32
    %c0_i32_0 = arith.constant 0 : i32
    return %arg0, %c0_i32 : i32, i32
  }
}

</mosaic_0001>

<llo_original>
// kernel: tpu_custom_call.1
$region0: #{tpu_custom_call.1}
  #allocation0 [shape = 'u32[]', space=smem, size = 0x4, offset = 0x4, fixed_abs, tag = 'smem constant byte address 0x4 - core index']
  #allocation1 [shape = 'u32[144,128]{1,0:T(1,128)}', space=vmem, size = 0x12000, scoped, tag = 'internal scratch']
  %s0 = inlined_call_operand.vmem [shape: s32[1,16,1], index: 0, kind: input, shape index: {}]
  %s1 = inlined_call_operand.hbm [shape: bf16[256,128], index: 1, kind: input, shape index: {}]
  %s2 = inlined_call_operand.hbm [shape: bf16[16,128], index: 2, kind: output, shape index: {}]
  %s3 = sld [smem:[#allocation0]]
  $region22: #{tpu_custom_call.1} parent=0
    _
  %s5 = ssub.s32 1, %s3
  %s6 = scalar_select 0, %s5, %s3
  $region1: #{tpu_custom_call.1} parent=0
    #allocation2 [shape = 'u8[65536]{0}', space=vmem, size = 0x10000, scoped, tag = 'input window, operand 1, single buffered']
    #allocation3 [shape = 's32[1]{0}', space=sflag, size = 0x4, scoped, tag = 'scoped memory for tpu_custom_call.1']
    #allocation4 [shape = 's32[1]{0}', space=sflag, size = 0x4, scoped, tag = 'scoped memory for tpu_custom_call.1']
    #allocation5 [shape = 'u8[4096]{0}', space=vmem, size = 0x1000, scoped, tag = 'output window, operand 0, single buffered']
    %7 = vsyncpa [#allocation3], 0
    %8 = vsyncpa [#allocation4], 0
    // Predicated region
    $region2: #{tpu_custom_call.1} parent=1 // pred_check
      _
    $region3: #{tpu_custom_call.1} parent=1 // pred_check_branch
      %10 = sbr.rel (0) target = $region5
    $region4: #{tpu_custom_call.1} parent=1 // pred_region
      _
    $region5: #{tpu_custom_call.1} parent=1 // pred_fallthru
      _
    // Predicated region
    $region6: #{tpu_custom_call.1} parent=1 // pred_check
      _
    $region7: #{tpu_custom_call.1} parent=1 // pred_check_branch
      %12 = sbr.rel (0) target = $region9
    $region8: #{tpu_custom_call.1} parent=1 // pred_region
      %s14 = ssub.s32 2048, 2048
      %15 = vsyncadd [#allocation3], %s14
      %s16 = sshll.u32 [#allocation2], 4
      %s17 = int_to_ptr.vmem [resolvable:$true] %s16
      %22 = dma.hbm_to_vmem [thread:$0]  %s1, 2048, %s17, [#allocation3], 64, 64, 4
    $region9: #{tpu_custom_call.1} parent=1 // pred_fallthru
      _
    // Predicated region
    $region10: #{tpu_custom_call.1} parent=1 // pred_check
      _
    $region11: #{tpu_custom_call.1} parent=1 // pred_check_branch
      %24 = sbr.rel (0) target = $region13
    $region12: #{tpu_custom_call.1} parent=1 // pred_region
      %25 = dma.done [#allocation3], 2048
    $region13: #{tpu_custom_call.1} parent=1 // pred_fallthru
      _
    %v27 = vld [vmem:[%s0] sm:$0xff]
    %v28 = vld [vmem:[%s0 + $0x8] sm:$0xff]
    %vm29 = vcmp.gt.s32.totalorder %v27, 0
    %v30 = vsel %vm29, %v27, 0
    %vm31 = vcmp.gt.s32.totalorder %v28, 0
    %v32 = vsel %vm31, %v28, 0
    %vm33 = vcmp.lt.s32.totalorder %v30, 255
    %v34 = vsel %vm33, %v30, 255
    %vm35 = vcmp.lt.s32.totalorder %v32, 255
    %v36 = vsel %vm35, %v32, 255
    %v37 = vlaneseq
    %v38 = vand.u32 %v37, 127
    %v39 = vadd.s32 %v38, 128
    %40 = vset.pattern.permute.xlu0 0
    %41 = vperm.xlu0 %40, %v34
    %v42 = vpop.permute.xlu0 %41
    %43 = vset.pattern.permute.xlu0 0
    %44 = vperm.xlu0 %43, %v36
    %v45 = vpop.permute.xlu0 %44
    %vm46 = vcmp.eq.s32.totalorder %v42, %v38
    %vm47 = vcmp.eq.s32.totalorder %v42, %v39
    %vm48 = vcmp.eq.s32.totalorder %v45, %v38
    %vm49 = vcmp.eq.s32.totalorder %v45, %v39
    %v50 = vsel %vm46, 1, 0
    %v51 = vsel %vm47, 1, 0
    %v52 = vsel %vm48, 1, 0
    %v53 = vsel %vm49, 1, 0
    %v54 = vcvt.s32.f32 %v50
    %v55 = vcvt.s32.f32 %v51
    %v56 = vcvt.s32.f32 %v52
    %v57 = vcvt.s32.f32 %v53
    %v58 = vpack.c.bf16 %v56, %v54
    %v59 = vpack.c.bf16 %v57, %v55
    %v60 = vld [vmem:[#allocation2] sm:$0xf]
    %v61 = vld [vmem:[#allocation2 + $0x4] sm:$0xf]
    %v62 = vld [vmem:[#allocation2 + $0x8] sm:$0xf]
    %v63 = vld [vmem:[#allocation2 + $0xc] sm:$0xf]
    %v64 = vld [vmem:[#allocation2 + $0x10] sm:$0xf]
    %v65 = vld [vmem:[#allocation2 + $0x14] sm:$0xf]
    %v66 = vld [vmem:[#allocation2 + $0x18] sm:$0xf]
    %v67 = vld [vmem:[#allocation2 + $0x1c] sm:$0xf]
    %v68 = vld [vmem:[#allocation2 + $0x20] sm:$0xf]
    %v69 = vld [vmem:[#allocation2 + $0x24] sm:$0xf]
    %v70 = vld [vmem:[#allocation2 + $0x28] sm:$0xf]
    %v71 = vld [vmem:[#allocation2 + $0x2c] sm:$0xf]
    %v72 = vld [vmem:[#allocation2 + $0x30] sm:$0xf]
    %v73 = vld [vmem:[#allocation2 + $0x34] sm:$0xf]
    %v74 = vld [vmem:[#allocation2 + $0x38] sm:$0xf]
    %v75 = vld [vmem:[#allocation2 + $0x3c] sm:$0xf]
    %v76 = vld [vmem:[#allocation2 + $0x40] sm:$0xf]
    %v77 = vld [vmem:[#allocation2 + $0x44] sm:$0xf]
    %v78 = vld [vmem:[#allocation2 + $0x48] sm:$0xf]
    %v79 = vld [vmem:[#allocation2 + $0x4c] sm:$0xf]
    %v80 = vld [vmem:[#allocation2 + $0x50] sm:$0xf]
    %v81 = vld [vmem:[#allocation2 + $0x54] sm:$0xf]
    %v82 = vld [vmem:[#allocation2 + $0x58] sm:$0xf]
    %v83 = vld [vmem:[#allocation2 + $0x5c] sm:$0xf]
    %v84 = vld [vmem:[#allocation2 + $0x60] sm:$0xf]
    %v85 = vld [vmem:[#allocation2 + $0x64] sm:$0xf]
    %v86 = vld [vmem:[#allocation2 + $0x68] sm:$0xf]
    %v87 = vld [vmem:[#allocation2 + $0x6c] sm:$0xf]
    %v88 = vld [vmem:[#allocation2 + $0x70] sm:$0xf]
    %v89 = vld [vmem:[#allocation2 + $0x74] sm:$0xf]
    %v90 = vld [vmem:[#allocation2 + $0x78] sm:$0xf]
    %v91 = vld [vmem:[#allocation2 + $0x7c] sm:$0xf]
    %v124 = vunpack.c.l.b16 %v60
    %v125 = vunpack.c.l.b16 %v61
    %v126 = vunpack.c.l.b16 %v62
    %v127 = vunpack.c.l.b16 %v63
    %v128 = vunpack.c.l.b16 %v64
    %v129 = vunpack.c.l.b16 %v65
    %v130 = vunpack.c.l.b16 %v66
    %v131 = vunpack.c.l.b16 %v67
    %v132 = vunpack.c.l.b16 %v68
    %v133 = vunpack.c.l.b16 %v69
    %v134 = vunpack.c.l.b16 %v70
    %v135 = vunpack.c.l.b16 %v71
    %v136 = vunpack.c.l.b16 %v72
    %v137 = vunpack.c.l.b16 %v73
    %v138 = vunpack.c.l.b16 %v74
    %v139 = vunpack.c.l.b16 %v75
    %v140 = vunpack.c.l.b16 %v76
    %v141 = vunpack.c.l.b16 %v77
    %v142 = vunpack.c.l.b16 %v78
    %v143 = vunpack.c.l.b16 %v79
    %v144 = vunpack.c.l.b16 %v80
    %v145 = vunpack.c.l.b16 %v81
    %v146 = vunpack.c.l.b16 %v82
    %v147 = vunpack.c.l.b16 %v83
    %v148 = vunpack.c.l.b16 %v84
    %v149 = vunpack.c.l.b16 %v85
    %v150 = vunpack.c.l.b16 %v86
    %v151 = vunpack.c.l.b16 %v87
    %v152 = vunpack.c.l.b16 %v88
    %v153 = vunpack.c.l.b16 %v89
    %v154 = vunpack.c.l.b16 %v90
    %v155 = vunpack.c.l.b16 %v91
    %v156 = vpack.c.b16 %v125, %v124
    %v157 = vpack.c.b16 %v127, %v126
    %v158 = vpack.c.b16 %v129, %v128
    %v159 = vpack.c.b16 %v131, %v130
    %v160 = vpack.c.b16 %v133, %v132
    %v161 = vpack.c.b16 %v135, %v134
    %v162 = vpack.c.b16 %v137, %v136
    %v163 = vpack.c.b16 %v139, %v138
    %v164 = vpack.c.b16 %v141, %v140
    %v165 = vpack.c.b16 %v143, %v142
    %v166 = vpack.c.b16 %v145, %v144
    %v167 = vpack.c.b16 %v147, %v146
    %v168 = vpack.c.b16 %v149, %v148
    %v169 = vpack.c.b16 %v151, %v150
    %v170 = vpack.c.b16 %v153, %v152
    %v171 = vpack.c.b16 %v155, %v154
    %188 = vmatprep.subr.bf16.mxu0 0
    %189 = vmatpush1.bf16.msra.mxu0 %v163
    %190 = vmatprep.subr.bf16.mxu0 0
    %191 = vmatpush1.bf16.msra.mxu0 %v162
    %192 = vmatprep.subr.bf16.mxu0 0
    %193 = vmatpush1.bf16.msra.mxu0 %v161
    %194 = vmatprep.subr.bf16.mxu0 0
    %195 = vmatpush1.bf16.msra.mxu0 %v160
    %196 = vmatprep.subr.bf16.mxu0 0
    %197 = vmatpush1.bf16.msra.mxu0 %v159
    %198 = vmatprep.subr.bf16.mxu0 0
    %199 = vmatpush1.bf16.msra.mxu0 %v158
    %200 = vmatprep.subr.bf16.mxu0 0
    %201 = vmatpush1.bf16.msra.mxu0 %v157
    %202 = vmatprep.subr.bf16.mxu0 0
    %203 = vmatpush1.bf16.msra.mxu0 %v156
    %204 = vmatprep.subr.bf16.mxu0 0
    %205 = vmatpush2.bf16.msra.mxu0 %v171
    %206 = vmatprep.subr.bf16.mxu0 0
    %207 = vmatpush2.bf16.msra.mxu0 %v170
    %208 = vmatprep.subr.bf16.mxu0 0
    %209 = vmatpush2.bf16.msra.mxu0 %v169
    %210 = vmatprep.subr.bf16.mxu0 0
    %211 = vmatpush2.bf16.msra.mxu0 %v168
    %212 = vmatprep.subr.bf16.mxu0 0
    %213 = vmatpush2.bf16.msra.mxu0 %v167
    %214 = vmatprep.subr.bf16.mxu0 0
    %215 = vmatpush2.bf16.msra.mxu0 %v166
    %216 = vmatprep.subr.bf16.mxu0 0
    %217 = vmatpush2.bf16.msra.mxu0 %v165
    %218 = vmatprep.subr.bf16.mxu0 0
    %219 = vmatpush2.bf16.msra.mxu0 %v164
    %220 = vmatprep.mubr.bf16.mxu0 %v59
    %221 = vmatmul.mubr.bf16.gmra.mxu0 %v58
    %v222 = vpop.f32.mrf.mxu0
    %v223 = vadd.f32 0.0, %v222
    %v224 = vpop.f32.mrf.mxu0
    %v225 = vpop.f32.mrf.mxu0
    %v226 = vadd.f32 0.0, %v225
    %v227 = vpop.f32.mrf.mxu0
    %228 = vdwg.mxu0
    %v229 = vmul.f32 %v223, 11.313708
    %v230 = vmul.f32 %v226, 11.313708
    %v231 = vpack.c.bf16 %v230, %v229
    %v233 = vunpack.c.l.b16 %v231
    %v234 = vunpack.c.h.b16 %v231
    %v235 = vpack.c.b16 %v233, %v233
    %v236 = vpack.c.b16 %v234, %v234
    %239 = vst [vmem:[#allocation5] sm:$0xf] %v235
    %240 = vst [vmem:[#allocation5 + $0x4] sm:$0xf] %v236
    // Predicated region
    $region14: #{tpu_custom_call.1} parent=1 // pred_check
      _
    $region15: #{tpu_custom_call.1} parent=1 // pred_check_branch
      %242 = sbr.rel (0) target = $region17
    $region16: #{tpu_custom_call.1} parent=1 // pred_region
      %s244 = ssub.s32 128, 128
      %245 = vsyncadd [#allocation4], %s244
      %s246 = sshll.u32 [#allocation5], 4
      %s247 = int_to_ptr.vmem [resolvable:$true] %s246
      %252 = dma.vmem_to_hbm [thread:$0]  %s247, 128, %s2, [#allocation4], 64, 64, 4
    $region17: #{tpu_custom_call.1} parent=1 // pred_fallthru
      _
    // Predicated region
    $region18: #{tpu_custom_call.1} parent=1 // pred_check
      _
    $region19: #{tpu_custom_call.1} parent=1 // pred_check_branch
      %254 = sbr.rel (0) target = $region21
    $region20: #{tpu_custom_call.1} parent=1 // pred_region
      %255 = dma.done [#allocation4], 128
    $region21: #{tpu_custom_call.1} parent=1 // pred_fallthru
      _
    %256 = vsyncpa [#allocation3], 1
    %257 = vsyncpa [#allocation4], 1

</llo_original>
